<compile_context>
chip_gen: v7x
topology: tpu7x:2x2x1
jax: 0.10.0
libtpu: 0.0.40
codegen_flags: <defaults>
</compile_context>

<pallas_src>
import functools

import jax
import jax.numpy as jnp
from jax.experimental import pallas as pl
from jax.experimental.pallas import tpu as pltpu


def _mish(x):
    # Mish: x * tanh(softplus(x))
    return x * jnp.tanh(jax.nn.softplus(x))


def _shift_left(a, k):
    """shifted[..., t] = a[..., t + k].

    Implemented as an XLU rotate (lane-aligned, no relayout copies). Lanes that
    wrap around at the far right are always masked out / never read.
    """
    if k == 0:
        return a
    size = a.shape[-1]
    return pltpu.roll(a, size - k, 1)          # == jnp.roll(a, -k, axis=-1)


def _patch_embed_kernel(x_ref, wf1_ref, bf1_ref, wf3_ref, bf3_ref, o_ref, *,
                        txp, pos_kernel, time_kernel, valid_lo, valid_hi):
    """One batch block per grid step; everything lane-dense.

    x_ref   : (C, Bblk*TXP)  channels on sublanes, batch x padded-time on lanes
    wf1_ref : (M, PK*C)      conv1 * BN1 * channel-pool * depthwise-conv2 * BN2
    bf1_ref : (M, 1)
    wf3_ref : (E, TK*M)      conv3 * BN3
    bf3_ref : (E, 1)
    o_ref   : (E, Bblk*TXP)  lane-dense output; wrapper slices / transposes
    """
    _, L = x_ref.shape
    M = wf1_ref.shape[0]
    PK, TK = pos_kernel, time_kernel
    n_chunks = L // txp

    wf1 = wf1_ref[...]
    bf1 = bf1_ref[...]
    wf3 = wf3_ref[...]
    bf3 = bf3_ref[...]
    mxu_dtype = wf1.dtype                       # bf16 on the fast path, else f32

    x_all = x_ref[...]                          # (C, L) f32

    # Stage 1: conv1 + BN1 + channel pool + depthwise conv2 + BN2 folded into
    # ONE matmul over a roll-built im2col slab (contracting dim PK*C).
    slab1 = jnp.concatenate([_shift_left(x_all, k) for k in range(PK)], axis=0)
    z = jnp.dot(wf1, slab1.astype(mxu_dtype),
                preferred_element_type=jnp.float32) + bf1
    z = _mish(z)                                # (M, L) f32
    # (Dropout: identity in eval mode.)

    # Zero every lane outside [valid_lo, valid_hi) within its batch chunk:
    # realizes the time-conv zero padding and kills pad-only / roll-wrapped /
    # cross-chunk lanes.
    lane1 = jax.lax.broadcasted_iota(jnp.int32, (M, txp), 1)
    if n_chunks > 1:
        lane = jnp.concatenate([lane1] * n_chunks, axis=1)
    else:
        lane = lane1
    z = jnp.where((lane >= valid_lo) & (lane < valid_hi), z, 0.0)

    # Stage 2: conv3 + BN3 folded into ONE matmul (contracting dim TK*M).
    slab3 = jnp.concatenate([_shift_left(z, k) for k in range(TK)], axis=0)
    y3 = jnp.dot(wf3, slab3.astype(mxu_dtype),
                 preferred_element_type=jnp.float32) + bf3
    o_ref[...] = _mish(y3).astype(o_ref.dtype)  # lane-dense full-width store


def _derive_shapes(seq_len, position_kernel, channels_kernel, time_kernel,
                   time_stride):
    position_padding = int((position_kernel - 1) / 2) + 1
    new_seq_len = int(seq_len + 2 * position_padding - position_kernel + 1)
    time_padding = (time_stride - 1) * new_seq_len + time_kernel - time_stride
    if (time_kernel % 2 == 0) and (time_stride % 2 == 0):
        time_padding = int(time_padding / 2) - 1
    elif (time_kernel % 2 != 0) and (time_stride % 2 != 0):
        time_padding = int(time_padding / 2) - 1
    else:
        time_padding = int(time_padding / 2)
    t_out = (new_seq_len + 2 * time_padding - time_kernel) // time_stride + 1
    return position_padding, new_seq_len, time_padding, t_out


def _fold_params(raw, *, n_channels, position_kernel, channels_kernel,
                 time_kernel):
    """Fold conv biases, eval-mode BN scale/shift AND the channel-group average
    pooling into two matmul weight sets."""
    w1, b1, s1, sh1 = raw["w1"], raw["b1"], raw["s1"], raw["sh1"]
    w2, b2, s2, sh2 = raw["w2"], raw["b2"], raw["s2"], raw["sh2"]
    w3, b3, s3, sh3 = raw["w3"], raw["b3"], raw["s3"], raw["sh3"]
    M = w1.shape[0]
    E = w3.shape[0]
    gsz = n_channels // channels_kernel
    # conv1 + BN1 + pool + depthwise conv2 + BN2  ->  wf1 [M, PK*C], bf1 [M]
    wf1 = (s2 * s1)[:, None, None] * w1[:, :, None] * w2[:, None, :]  # [M,PK,CK]
    wf1 = jnp.repeat(wf1, gsz, axis=2) / gsz                          # [M,PK,C]
    wf1 = wf1.reshape(M, position_kernel * n_channels)
    bf1 = s2 * (b2 + w2.sum(axis=1) * (s1 * b1 + sh1)) + sh2
    # conv3 + BN3  ->  wf3 [E, TK*M], bf3 [E]
    wf3 = s3[:, None, None] * jnp.transpose(w3, (0, 2, 1))            # [E,TK,M]
    wf3 = wf3.reshape(E, time_kernel * M)
    bf3 = s3 * b3 + sh3
    return wf1, bf1[:, None], wf3, bf3[:, None]


def _pick_batch_block(B, per_batch_vmem_bytes, *, vmem_budget_bytes,
                      megacore_split_bytes=2 * 1024 * 1024):
    """Largest divisor of B whose per-step working set fits the VMEM budget.

    Small problems collapse to a single grid step (per-step overhead dominates
    on single-TC v5e/v6e); only keep >= 2 steps when there is enough per-step
    work to be worth splitting across v7x's two TensorCores.
    """
    bb = max(1, min(B, vmem_budget_bytes // max(per_batch_vmem_bytes, 1)))
    if B >= 2 and B * per_batch_vmem_bytes > megacore_split_bytes:
        bb = min(bb, max(1, B // 2))
    while B % bb:
        bb -= 1
    return bb


def patch_embedding_forward(x, raw_params, *, position_kernel, channels_kernel,
                            channels_stride, time_kernel, time_stride,
                            use_bf16_mxu=False, batch_block=None,
                            vmem_budget_bytes=12 * 1024 * 1024):
    """x: [B, 1, C, T] float32  ->  [B, t_out, emb_size] float32."""
    B, one, C, T = x.shape
    assert one == 1
    pos_pad, new_seq_len, time_pad, t_out = _derive_shapes(
        T, position_kernel, channels_kernel, time_kernel, time_stride)
    # TODO(synk): general time_stride needs strided in-kernel extraction; stride 1 only.
    assert time_stride == 1
    # TODO(synk): non-divisible adaptive-avg-pool channel bins not implemented.
    assert C % channels_kernel == 0
    del channels_stride  # (CK,1) kernel over a CK-high axis -> output height 1 regardless

    wf1, bf1, wf3, bf3 = _fold_params(
        raw_params, n_channels=C, position_kernel=position_kernel,
        channels_kernel=channels_kernel, time_kernel=time_kernel)
    if use_bf16_mxu:
        # Pre-cast MXU operand weights host-side so the kernel never re-casts.
        wf1 = wf1.astype(jnp.bfloat16)
        wf3 = wf3.astype(jnp.bfloat16)
    M, R = wf1.shape
    E, Q = wf3.shape

    # Per-batch time chunk, padded to a multiple of 128 lanes with both conv
    # halos (and the time-conv zero padding) baked into the zero padding.
    left = time_pad + pos_pad
    min_len = left + T + pos_pad + time_pad
    TXP = ((min_len + 127) // 128) * 128
    NT = TXP - (position_kernel - 1)
    assert NT >= time_pad + new_seq_len          # valid-mask correctness
    assert t_out + time_kernel - 1 <= TXP        # stage-2 reads stay in-chunk

    # Layout plumbing (XLA side): [B,1,C,T] -> [C, B, TXP] -> [C, B*TXP].
    xt = jnp.transpose(x[:, 0].astype(jnp.float32), (1, 0, 2))     # [C, B, T]
    xt = jnp.pad(xt, ((0, 0), (0, 0), (left, TXP - left - T)))     # [C, B, TXP]
    x2 = xt.reshape(C, B * TXP)

    if batch_block is None:
        # Working set per batch element (f32): double-buffered in/out blocks
        # plus the in-kernel im2col slabs and activations.
        per_batch = (2 * (C + E) + position_kernel * C + time_kernel * M
                     + M + E) * TXP * 4
        batch_block = _pick_batch_block(B, per_batch,
                                        vmem_budget_bytes=vmem_budget_bytes)
    assert B % batch_block == 0
    Lblk = batch_block * TXP
    grid = (B // batch_block,)
    # TODO(synk): for very long sequences add a time-axis grid dimension with a
    # (PK+TK-2) halo in the index_map instead of one VMEM block per batch chunk.

    kern = functools.partial(
        _patch_embed_kernel, txp=TXP, pos_kernel=position_kernel,
        time_kernel=time_kernel, valid_lo=time_pad,
        valid_hi=time_pad + new_seq_len)

    out = pl.pallas_call(
        kern,
        out_shape=jax.ShapeDtypeStruct((E, B * TXP), jnp.float32),
        grid_spec=pltpu.PrefetchScalarGridSpec(
            num_scalar_prefetch=0,
            grid=grid,
            in_specs=[
                pl.BlockSpec((C, Lblk), lambda b: (0, b)),
                pl.BlockSpec((M, R), lambda b: (0, 0)),
                pl.BlockSpec((M, 1), lambda b: (0, 0)),
                pl.BlockSpec((E, Q), lambda b: (0, 0)),
                pl.BlockSpec((E, 1), lambda b: (0, 0)),
            ],
            out_specs=pl.BlockSpec((E, Lblk), lambda b: (0, b)),
        ),
        compiler_params=pltpu.CompilerParams(
            dimension_semantics=("parallel",),
            vmem_limit_bytes=32 * 1024 * 1024),
    )(x2, wf1, bf1, wf3, bf3)

    # Layout plumbing back: (E, B*TXP) -> (B, t_out, E)   ('b (c t) o').
    out = out.reshape(E, B, TXP)[:, :, :t_out]
    return jnp.transpose(out, (1, 2, 0))


def init_params(key, *, n_maps, emb_size, position_kernel, channels_kernel,
                time_kernel):
    """Deterministic synthetic parameters (conv weights + eval-mode BN stats)."""
    ks = jax.random.split(key, 18)
    f32 = jnp.float32

    def bn(kw, kb, km, kv, n):
        gamma = 1.0 + 0.1 * jax.random.normal(kw, (n,), f32)
        beta = 0.1 * jax.random.normal(kb, (n,), f32)
        rmean = 0.1 * jax.random.normal(km, (n,), f32)
        rvar = 1.0 + 0.1 * jnp.abs(jax.random.normal(kv, (n,), f32))
        scale = gamma / jnp.sqrt(rvar + 1e-5)
        shift = beta - rmean * scale
        return scale, shift

    M, E, PK, CK, TK = n_maps, emb_size, position_kernel, channels_kernel, time_kernel
    w1 = 0.2 * jax.random.normal(ks[0], (M, PK), f32)          # Conv2d(1,M,(1,PK))
    b1 = 0.1 * jax.random.normal(ks[1], (M,), f32)
    s1, sh1 = bn(ks[2], ks[3], ks[4], ks[5], M)
    w2 = 0.2 * jax.random.normal(ks[6], (M, CK), f32)          # depthwise (CK,1)
    b2 = 0.1 * jax.random.normal(ks[7], (M,), f32)
    s2, sh2 = bn(ks[8], ks[9], ks[10], ks[11], M)
    w3 = 0.2 * jax.random.normal(ks[12], (E, M, TK), f32)      # Conv2d(M,E,(1,TK))
    b3 = 0.1 * jax.random.normal(ks[13], (E,), f32)
    s3, sh3 = bn(ks[14], ks[15], ks[16], ks[17], E)
    return {"w1": w1, "b1": b1, "s1": s1, "sh1": sh1,
            "w2": w2, "b2": b2, "s2": s2, "sh2": sh2,
            "w3": w3, "b3": b3, "s3": s3, "sh3": sh3}


def reference_forward(x, raw, *, position_kernel, channels_kernel,
                      channels_stride, time_kernel, time_stride):
    """Pure-JAX (lax.conv) reference mirroring the PyTorch module in eval mode."""
    B, _, C, T = x.shape
    pos_pad, new_seq_len, time_pad, _ = _derive_shapes(
        T, position_kernel, channels_kernel, time_kernel, time_stride)
    M = raw["w1"].shape[0]
    dn = ("NCHW", "OIHW", "NCHW")
    hp = jax.lax.Precision.HIGHEST

    w1_4d = raw["w1"][:, None, None, :]                        # [M,1,1,PK]
    y = jax.lax.conv_general_dilated(
        x, w1_4d, window_strides=(1, 1),
        padding=((0, 0), (pos_pad, pos_pad)), dimension_numbers=dn,
        precision=hp)
    y = y + raw["b1"][None, :, None, None]
    y = y * raw["s1"][None, :, None, None] + raw["sh1"][None, :, None, None]

    gsz = C // channels_kernel
    y = y.reshape(B, M, channels_kernel, gsz, new_seq_len).mean(axis=3)

    w2_4d = raw["w2"][:, None, :, None]                        # [M,1,CK,1]
    y = jax.lax.conv_general_dilated(
        y, w2_4d, window_strides=(channels_stride, 1), padding="VALID",
        dimension_numbers=dn, feature_group_count=M, precision=hp)
    y = y + raw["b2"][None, :, None, None]
    y = y * raw["s2"][None, :, None, None] + raw["sh2"][None, :, None, None]
    y = _mish(y)

    w3_4d = raw["w3"][:, :, None, :]                           # [E,M,1,TK]
    y = jax.lax.conv_general_dilated(
        y, w3_4d, window_strides=(1, time_stride),
        padding=((0, 0), (time_pad, time_pad)), dimension_numbers=dn,
        precision=hp)
    y = y + raw["b3"][None, :, None, None]
    y = y * raw["s3"][None, :, None, None] + raw["sh3"][None, :, None, None]
    y = _mish(y)

    B_, E_, c_, t_ = y.shape                                   # c_ == 1
    return y.reshape(B_, E_, c_ * t_).transpose(0, 2, 1)       # 'b o c t -> b (c t) o'


if __name__ == "__main__":
    # Module hyper-params (small, consistent with the PyTorch constructor)
    seq_len, emb_size, n_maps = 64, 32, 8
    position_kernel, channels_kernel, channels_stride = 5, 4, 1
    time_kernel, time_stride, dropout = 5, 1, 0.0

    B, C = 4, 16                                               # batch, EEG channels
    key = jax.random.PRNGKey(0)
    kx, kp = jax.random.split(key)
    x = jax.random.normal(kx, (B, 1, C, seq_len), jnp.float32)

    raw = init_params(kp, n_maps=n_maps, emb_size=emb_size,
                      position_kernel=position_kernel,
                      channels_kernel=channels_kernel, time_kernel=time_kernel)

    ref = reference_forward(
        x, raw, position_kernel=position_kernel,
        channels_kernel=channels_kernel, channels_stride=channels_stride,
        time_kernel=time_kernel, time_stride=time_stride)
    ref = jax.block_until_ready(ref)

    # f32 MXU-operand path
    out = patch_embedding_forward(
        x, raw, position_kernel=position_kernel,
        channels_kernel=channels_kernel, channels_stride=channels_stride,
        time_kernel=time_kernel, time_stride=time_stride)
    out = jax.block_until_ready(out)
    assert out.shape == ref.shape, (out.shape, ref.shape)
    assert jnp.allclose(out, ref, atol=2e-2, rtol=2e-2), float(
        jnp.max(jnp.abs(out - ref)))

    # bf16 MXU-operand fast path (f32 accumulation) for v6e/v7x
    out_bf16 = patch_embedding_forward(
        x, raw, position_kernel=position_kernel,
        channels_kernel=channels_kernel, channels_stride=channels_stride,
        time_kernel=time_kernel, time_stride=time_stride, use_bf16_mxu=True)
    out_bf16 = jax.block_until_ready(out_bf16)
    assert jnp.allclose(out_bf16, ref, atol=5e-2, rtol=5e-2), float(
        jnp.max(jnp.abs(out_bf16 - ref)))

    print("KERNEL_OK")
</pallas_src>

<mosaic_0001>
module attributes {stable_mosaic.version = 11 : i64} {
  func.func @_patch_embed_kernel(%arg0: i32, %arg1: memref<16x512xf32, #tpu.memory_space<vmem>>, %arg2: memref<8x80xf32, #tpu.memory_space<vmem>>, %arg3: memref<8x1xf32, #tpu.memory_space<vmem>>, %arg4: memref<32x40xf32, #tpu.memory_space<vmem>>, %arg5: memref<32x1xf32, #tpu.memory_space<vmem>>, %arg6: memref<32x512xf32, #tpu.memory_space<vmem>>) attributes {dimension_semantics = [#tpu.dimension_semantics<parallel>], iteration_bounds = array<i64: 1>, scalar_prefetch = 0 : i64, scratch_operands = 0 : i64, tpu.core_type = #tpu.core_type<tc>, window_params = [{transform_indices = @transform_0, window_bounds = array<i64: 16, 512>}, {pipeline_mode = #tpu.pipeline_mode<synchronous>, transform_indices = @transform_1, window_bounds = array<i64: 8, 80>}, {pipeline_mode = #tpu.pipeline_mode<synchronous>, transform_indices = @transform_2, window_bounds = array<i64: 8, 1>}, {pipeline_mode = #tpu.pipeline_mode<synchronous>, transform_indices = @transform_3, window_bounds = array<i64: 32, 40>}, {pipeline_mode = #tpu.pipeline_mode<synchronous>, transform_indices = @transform_4, window_bounds = array<i64: 32, 1>}, {transform_indices = @transform_5, window_bounds = array<i64: 32, 512>}]} {
    %c0 = arith.constant 0 : index
    %c0_0 = arith.constant 0 : index
    %0 = vector.load %arg2[%c0, %c0_0] : memref<8x80xf32, #tpu.memory_space<vmem>>, vector<8x80xf32>
    %c0_1 = arith.constant 0 : index
    %c0_2 = arith.constant 0 : index
    %1 = vector.load %arg3[%c0_1, %c0_2] : memref<8x1xf32, #tpu.memory_space<vmem>>, vector<8x1xf32>
    %c0_3 = arith.constant 0 : index
    %c0_4 = arith.constant 0 : index
    %2 = vector.load %arg4[%c0_3, %c0_4] : memref<32x40xf32, #tpu.memory_space<vmem>>, vector<32x40xf32>
    %c0_5 = arith.constant 0 : index
    %c0_6 = arith.constant 0 : index
    %3 = vector.load %arg5[%c0_5, %c0_6] : memref<32x1xf32, #tpu.memory_space<vmem>>, vector<32x1xf32>
    %c0_7 = arith.constant 0 : index
    %c0_8 = arith.constant 0 : index
    %4 = vector.load %arg1[%c0_7, %c0_8] : memref<16x512xf32, #tpu.memory_space<vmem>>, vector<16x512xf32>
    %c511_i32 = arith.constant 511 : i32
    %5 = tpu.dynamic_rotate %4 by %c511_i32 dim 1 : vector<16x512xf32>, i32 -> vector<16x512xf32>
    %c510_i32 = arith.constant 510 : i32
    %6 = tpu.dynamic_rotate %4 by %c510_i32 dim 1 : vector<16x512xf32>, i32 -> vector<16x512xf32>
    %c509_i32 = arith.constant 509 : i32
    %7 = tpu.dynamic_rotate %4 by %c509_i32 dim 1 : vector<16x512xf32>, i32 -> vector<16x512xf32>
    %c508_i32 = arith.constant 508 : i32
    %8 = tpu.dynamic_rotate %4 by %c508_i32 dim 1 : vector<16x512xf32>, i32 -> vector<16x512xf32>
    %9 = tpu.concatenate %4, %5, %6, %7, %8 in 0 : vector<16x512xf32>, vector<16x512xf32>, vector<16x512xf32>, vector<16x512xf32>, vector<16x512xf32> -> vector<80x512xf32>
    %cst = arith.constant dense<0.000000e+00> : vector<8x512xf32>
    %10 = tpu.matmul %0, %9, %cst {dimension_numbers = #tpu.dot_dimension_numbers<[1], [0], [0], [1], [0, 0, 1, 1], [], []>} : vector<8x80xf32>, vector<80x512xf32>, vector<8x512xf32> -> vector<8x512xf32>
    %11 = vector.broadcast %1 : vector<8x1xf32> to vector<8x512xf32>
    %12 = arith.addf %10, %11 : vector<8x512xf32>
    %cst_9 = arith.constant 0.000000e+00 : f32
    %13 = vector.broadcast %cst_9 : f32 to vector<8x512xf32>
    %14 = arith.maximumf %12, %13 : vector<8x512xf32>
    %15 = vector.broadcast %cst_9 : f32 to vector<8x512xf32>
    %16 = arith.subf %12, %15 : vector<8x512xf32>
    %17 = arith.cmpf one, %16, %16 : vector<8x512xf32>
    %18 = vector.broadcast %cst_9 : f32 to vector<8x512xf32>
    %19 = arith.addf %12, %18 : vector<8x512xf32>
    %20 = math.absf %16 : vector<8x512xf32>
    %cst_10 = arith.constant 0.000000e+00 : f32
    %21 = vector.broadcast %cst_10 : f32 to vector<8x512xf32>
    %22 = arith.subf %21, %20 : vector<8x512xf32>
    %23 = math.exp %22 : vector<8x512xf32>
    %24 = math.log1p %23 : vector<8x512xf32>
    %25 = arith.addf %14, %24 : vector<8x512xf32>
    %26 = arith.select %17, %19, %25 : vector<8x512xi1>, vector<8x512xf32>
    %27 = math.tanh %26 : vector<8x512xf32>
    %28 = arith.mulf %12, %27 : vector<8x512xf32>
    %29 = tpu.iota {dimensions = array<i32: 1>} : vector<8x128xi32>
    %30 = tpu.concatenate %29, %29, %29, %29 in 1 : vector<8x128xi32>, vector<8x128xi32>, vector<8x128xi32>, vector<8x128xi32> -> vector<8x512xi32>
    %c1_i32 = arith.constant 1 : i32
    %31 = vector.broadcast %c1_i32 : i32 to vector<8x512xi32>
    %32 = arith.cmpi sge, %30, %31 : vector<8x512xi32>
    %c67_i32 = arith.constant 67 : i32
    %33 = vector.broadcast %c67_i32 : i32 to vector<8x512xi32>
    %34 = arith.cmpi slt, %30, %33 : vector<8x512xi32>
    %35 = arith.andi %32, %34 : vector<8x512xi1>
    %cst_11 = arith.constant 0.000000e+00 : f32
    %36 = vector.broadcast %cst_11 : f32 to vector<8x512xf32>
    %37 = arith.select %35, %28, %36 : vector<8x512xi1>, vector<8x512xf32>
    %c511_i32_12 = arith.constant 511 : i32
    %38 = tpu.dynamic_rotate %37 by %c511_i32_12 dim 1 : vector<8x512xf32>, i32 -> vector<8x512xf32>
    %c510_i32_13 = arith.constant 510 : i32
    %39 = tpu.dynamic_rotate %37 by %c510_i32_13 dim 1 : vector<8x512xf32>, i32 -> vector<8x512xf32>
    %c509_i32_14 = arith.constant 509 : i32
    %40 = tpu.dynamic_rotate %37 by %c509_i32_14 dim 1 : vector<8x512xf32>, i32 -> vector<8x512xf32>
    %c508_i32_15 = arith.constant 508 : i32
    %41 = tpu.dynamic_rotate %37 by %c508_i32_15 dim 1 : vector<8x512xf32>, i32 -> vector<8x512xf32>
    %42 = tpu.concatenate %37, %38, %39, %40, %41 in 0 : vector<8x512xf32>, vector<8x512xf32>, vector<8x512xf32>, vector<8x512xf32>, vector<8x512xf32> -> vector<40x512xf32>
    %cst_16 = arith.constant dense<0.000000e+00> : vector<32x512xf32>
    %43 = tpu.matmul %2, %42, %cst_16 {dimension_numbers = #tpu.dot_dimension_numbers<[1], [0], [0], [1], [0, 0, 1, 1], [], []>} : vector<32x40xf32>, vector<40x512xf32>, vector<32x512xf32> -> vector<32x512xf32>
    %44 = vector.broadcast %3 : vector<32x1xf32> to vector<32x512xf32>
    %45 = arith.addf %43, %44 : vector<32x512xf32>
    %cst_17 = arith.constant 0.000000e+00 : f32
    %46 = vector.broadcast %cst_17 : f32 to vector<32x512xf32>
    %47 = arith.maximumf %45, %46 : vector<32x512xf32>
    %48 = vector.broadcast %cst_17 : f32 to vector<32x512xf32>
    %49 = arith.subf %45, %48 : vector<32x512xf32>
    %50 = arith.cmpf one, %49, %49 : vector<32x512xf32>
    %51 = vector.broadcast %cst_17 : f32 to vector<32x512xf32>
    %52 = arith.addf %45, %51 : vector<32x512xf32>
    %53 = math.absf %49 : vector<32x512xf32>
    %cst_18 = arith.constant 0.000000e+00 : f32
    %54 = vector.broadcast %cst_18 : f32 to vector<32x512xf32>
    %55 = arith.subf %54, %53 : vector<32x512xf32>
    %56 = math.exp %55 : vector<32x512xf32>
    %57 = math.log1p %56 : vector<32x512xf32>
    %58 = arith.addf %47, %57 : vector<32x512xf32>
    %59 = arith.select %50, %52, %58 : vector<32x512xi1>, vector<32x512xf32>
    %60 = math.tanh %59 : vector<32x512xf32>
    %61 = arith.mulf %45, %60 : vector<32x512xf32>
    %c0_19 = arith.constant 0 : index
    %c0_20 = arith.constant 0 : index
    %62 = vector.load %arg6[%c0_19, %c0_20] : memref<32x512xf32, #tpu.memory_space<vmem>>, vector<32x512xf32>
    tpu.vector_store %arg6[%c0_19, %c0_20], %61 {strides = array<i32>} : memref<32x512xf32, #tpu.memory_space<vmem>>, vector<32x512xf32>,
    return
  }
  func.func @transform_0(%arg0: i32) -> (i32, i32) {
    %c0_i32 = arith.constant 0 : i32
    %c0_i32_0 = arith.constant 0 : i32
    return %c0_i32, %arg0 : i32, i32
  }
  func.func @transform_1(%arg0: i32) -> (i32, i32) {
    %c0_i32 = arith.constant 0 : i32
    %c0_i32_0 = arith.constant 0 : i32
    %c0_i32_1 = arith.constant 0 : i32
    return %c0_i32, %c0_i32_0 : i32, i32
  }
  func.func @transform_2(%arg0: i32) -> (i32, i32) {
    %c0_i32 = arith.constant 0 : i32
    %c0_i32_0 = arith.constant 0 : i32
    %c0_i32_1 = arith.constant 0 : i32
    return %c0_i32, %c0_i32_0 : i32, i32
  }
  func.func @transform_3(%arg0: i32) -> (i32, i32) {
    %c0_i32 = arith.constant 0 : i32
    %c0_i32_0 = arith.constant 0 : i32
    %c0_i32_1 = arith.constant 0 : i32
    return %c0_i32, %c0_i32_0 : i32, i32
  }
  func.func @transform_4(%arg0: i32) -> (i32, i32) {
    %c0_i32 = arith.constant 0 : i32
    %c0_i32_0 = arith.constant 0 : i32
    %c0_i32_1 = arith.constant 0 : i32
    return %c0_i32, %c0_i32_0 : i32, i32
  }
  func.func @transform_5(%arg0: i32) -> (i32, i32) {
    %c0_i32 = arith.constant 0 : i32
    %c0_i32_0 = arith.constant 0 : i32
    return %c0_i32, %arg0 : i32, i32
  }
}

</mosaic_0001>

<llo_original>
// kernel: tpu_custom_call.1
$region0: #{tpu_custom_call.1}
  #allocation0 [shape = 'u32[]', space=smem, size = 0x4, offset = 0x4, fixed_abs, tag = 'smem constant byte address 0x4 - core index']
  #allocation1 [shape = 'u32[144,128]{1,0:T(1,128)}', space=vmem, size = 0x12000, scoped, tag = 'internal scratch']
  %s0 = inlined_call_operand.hbm [shape: f32[16,512], index: 0, kind: input, shape index: {}]
  %s1 = inlined_call_operand.vmem [shape: f32[8,80], index: 1, kind: input, shape index: {}]
  %s2 = inlined_call_operand.vmem [shape: f32[8,1], index: 2, kind: input, shape index: {}]
  %s3 = inlined_call_operand.vmem [shape: f32[32,40], index: 3, kind: input, shape index: {}]
  %s4 = inlined_call_operand.vmem [shape: f32[32,1], index: 4, kind: input, shape index: {}]
  %s5 = inlined_call_operand.hbm [shape: f32[32,512], index: 5, kind: output, shape index: {}]
  %s6 = sld [smem:[#allocation0]]
  $region34: #{tpu_custom_call.1} parent=0
    _
  %s8 = ssub.s32 1, %s6
  %s9 = scalar_select 0, %s8, %s6
  $region1: #{tpu_custom_call.1} parent=0
    #allocation2 [shape = 'u8[32768]{0}', space=vmem, size = 0x8000, scoped, tag = 'input window, operand 0, single buffered']
    #allocation3 [shape = 's32[1]{0}', space=sflag, size = 0x4, scoped, tag = 'scoped memory for tpu_custom_call.1']
    #allocation4 [shape = 's32[1]{0}', space=sflag, size = 0x4, scoped, tag = 'scoped memory for tpu_custom_call.1']
    #allocation5 [shape = 'u8[65536]{0}', space=vmem, size = 0x10000, scoped, tag = 'output window, operand 0, single buffered']
    %10 = vsyncpa [#allocation3], 0
    %11 = vsyncpa [#allocation4], 0
    // Predicated region
    $region2: #{tpu_custom_call.1} parent=1 // pred_check
      _
    $region3: #{tpu_custom_call.1} parent=1 // pred_check_branch
      %13 = sbr.rel (0) target = $region5
    $region4: #{tpu_custom_call.1} parent=1 // pred_region
      %s15 = ssub.s32 1024, 1024
      %16 = vsyncadd [#allocation3], %s15
      %s17 = sshll.u32 [#allocation2], 4
      %s18 = int_to_ptr.vmem [resolvable:$true] %s17
      %23 = dma.hbm_to_vmem [thread:$0]  %s0, 1024, %s18, [#allocation3], 512, 512, 32
    $region5: #{tpu_custom_call.1} parent=1 // pred_fallthru
      _
    // Predicated region
    $region6: #{tpu_custom_call.1} parent=1 // pred_check
      _
    $region7: #{tpu_custom_call.1} parent=1 // pred_check_branch
      %25 = sbr.rel (0) target = $region9
    $region8: #{tpu_custom_call.1} parent=1 // pred_region
      _
    $region9: #{tpu_custom_call.1} parent=1 // pred_fallthru
      _
    // Predicated region
    $region10: #{tpu_custom_call.1} parent=1 // pred_check
      _
    $region11: #{tpu_custom_call.1} parent=1 // pred_check_branch
      %27 = sbr.rel (0) target = $region13
    $region12: #{tpu_custom_call.1} parent=1 // pred_region
      _
    $region13: #{tpu_custom_call.1} parent=1 // pred_fallthru
      _
    // Predicated region
    $region14: #{tpu_custom_call.1} parent=1 // pred_check
      _
    $region15: #{tpu_custom_call.1} parent=1 // pred_check_branch
      %29 = sbr.rel (0) target = $region17
    $region16: #{tpu_custom_call.1} parent=1 // pred_region
      _
    $region17: #{tpu_custom_call.1} parent=1 // pred_fallthru
      _
    // Predicated region
    $region18: #{tpu_custom_call.1} parent=1 // pred_check
      _
    $region19: #{tpu_custom_call.1} parent=1 // pred_check_branch
      %31 = sbr.rel (0) target = $region21
    $region20: #{tpu_custom_call.1} parent=1 // pred_region
      _
    $region21: #{tpu_custom_call.1} parent=1 // pred_fallthru
      _
    // Predicated region
    $region22: #{tpu_custom_call.1} parent=1 // pred_check
      _
    $region23: #{tpu_custom_call.1} parent=1 // pred_check_branch
      %33 = sbr.rel (0) target = $region25
    $region24: #{tpu_custom_call.1} parent=1 // pred_region
      %34 = dma.done [#allocation3], 1024
    $region25: #{tpu_custom_call.1} parent=1 // pred_fallthru
      _
    %v35 = vld [vmem:[%s1] sm:$0xff]
    %v36 = vld [vmem:[%s2] sm:$0xff]
    %v37 = vld [vmem:[%s3] sm:$0xff]
    %v38 = vld [vmem:[%s3 + $0x8] sm:$0xff]
    %v39 = vld [vmem:[%s3 + $0x10] sm:$0xff]
    %v40 = vld [vmem:[%s3 + $0x18] sm:$0xff]
    %v41 = vld [vmem:[%s4] sm:$0xff]
    %v42 = vld [vmem:[%s4 + $0x8] sm:$0xff]
    %v43 = vld [vmem:[%s4 + $0x10] sm:$0xff]
    %v44 = vld [vmem:[%s4 + $0x18] sm:$0xff]
    %v45 = vld [vmem:[#allocation2] sm:$0xff]
    %v46 = vld [vmem:[#allocation2 + $0x8] sm:$0xff]
    %v47 = vld [vmem:[#allocation2 + $0x10] sm:$0xff]
    %v48 = vld [vmem:[#allocation2 + $0x18] sm:$0xff]
    %v49 = vld [vmem:[#allocation2 + $0x20] sm:$0xff]
    %v50 = vld [vmem:[#allocation2 + $0x28] sm:$0xff]
    %v51 = vld [vmem:[#allocation2 + $0x30] sm:$0xff]
    %v52 = vld [vmem:[#allocation2 + $0x38] sm:$0xff]
    %53 = vrot.lane.b32.xlu0 %v45, 127
    %v54 = vpop.permute.xlu0 %53
    %55 = vrot.lane.b32.xlu0 %v49, 127
    %v56 = vpop.permute.xlu0 %55
    %57 = vrot.lane.b32.xlu0 %v46, 127
    %v58 = vpop.permute.xlu0 %57
    %59 = vrot.lane.b32.xlu0 %v50, 127
    %v60 = vpop.permute.xlu0 %59
    %61 = vrot.lane.b32.xlu0 %v47, 127
    %v62 = vpop.permute.xlu0 %61
    %63 = vrot.lane.b32.xlu0 %v51, 127
    %v64 = vpop.permute.xlu0 %63
    %65 = vrot.lane.b32.xlu0 %v48, 127
    %v66 = vpop.permute.xlu0 %65
    %67 = vrot.lane.b32.xlu0 %v52, 127
    %v68 = vpop.permute.xlu0 %67
    %v69 = vlaneseq
    %v70 = vand.u32 %v69, 127
    %vm71 = vcmp.lt.s32.totalorder %v70, 127
    %v72 = vsel %vm71, %v62, %v66
    %v73 = vsel %vm71, %v64, %v68
    %v74 = vsel %vm71, %v58, %v62
    %v75 = vsel %vm71, %v60, %v64
    %v76 = vsel %vm71, %v54, %v58
    %v77 = vsel %vm71, %v56, %v60
    %v78 = vsel %vm71, %v66, %v54
    %v79 = vsel %vm71, %v68, %v56
    %80 = vrot.lane.b32.xlu0 %v45, 126
    %v81 = vpop.permute.xlu0 %80
    %82 = vrot.lane.b32.xlu0 %v49, 126
    %v83 = vpop.permute.xlu0 %82
    %84 = vrot.lane.b32.xlu0 %v46, 126
    %v85 = vpop.permute.xlu0 %84
    %86 = vrot.lane.b32.xlu0 %v50, 126
    %v87 = vpop.permute.xlu0 %86
    %88 = vrot.lane.b32.xlu0 %v47, 126
    %v89 = vpop.permute.xlu0 %88
    %90 = vrot.lane.b32.xlu0 %v51, 126
    %v91 = vpop.permute.xlu0 %90
    %92 = vrot.lane.b32.xlu0 %v48, 126
    %v93 = vpop.permute.xlu0 %92
    %94 = vrot.lane.b32.xlu0 %v52, 126
    %v95 = vpop.permute.xlu0 %94
    %vm96 = vcmp.lt.s32.totalorder %v70, 126
    %v97 = vsel %vm96, %v89, %v93
    %v98 = vsel %vm96, %v91, %v95
    %v99 = vsel %vm96, %v85, %v89
    %v100 = vsel %vm96, %v87, %v91
    %v101 = vsel %vm96, %v81, %v85
    %v102 = vsel %vm96, %v83, %v87
    %v103 = vsel %vm96, %v93, %v81
    %v104 = vsel %vm96, %v95, %v83
    %105 = vrot.lane.b32.xlu0 %v45, 125
    %v106 = vpop.permute.xlu0 %105
    %107 = vrot.lane.b32.xlu0 %v49, 125
    %v108 = vpop.permute.xlu0 %107
    %109 = vrot.lane.b32.xlu0 %v46, 125
    %v110 = vpop.permute.xlu0 %109
    %111 = vrot.lane.b32.xlu0 %v50, 125
    %v112 = vpop.permute.xlu0 %111
    %113 = vrot.lane.b32.xlu0 %v47, 125
    %v114 = vpop.permute.xlu0 %113
    %115 = vrot.lane.b32.xlu0 %v51, 125
    %v116 = vpop.permute.xlu0 %115
    %117 = vrot.lane.b32.xlu0 %v48, 125
    %v118 = vpop.permute.xlu0 %117
    %119 = vrot.lane.b32.xlu0 %v52, 125
    %v120 = vpop.permute.xlu0 %119
    %vm121 = vcmp.lt.s32.totalorder %v70, 125
    %v122 = vsel %vm121, %v114, %v118
    %v123 = vsel %vm121, %v116, %v120
    %v124 = vsel %vm121, %v110, %v114
    %v125 = vsel %vm121, %v112, %v116
    %v126 = vsel %vm121, %v106, %v110
    %v127 = vsel %vm121, %v108, %v112
    %v128 = vsel %vm121, %v118, %v106
    %v129 = vsel %vm121, %v120, %v108
    %130 = vrot.lane.b32.xlu0 %v45, 124
    %v131 = vpop.permute.xlu0 %130
    %132 = vrot.lane.b32.xlu0 %v49, 124
    %v133 = vpop.permute.xlu0 %132
    %134 = vrot.lane.b32.xlu0 %v46, 124
    %v135 = vpop.permute.xlu0 %134
    %136 = vrot.lane.b32.xlu0 %v50, 124
    %v137 = vpop.permute.xlu0 %136
    %138 = vrot.lane.b32.xlu0 %v47, 124
    %v139 = vpop.permute.xlu0 %138
    %140 = vrot.lane.b32.xlu0 %v51, 124
    %v141 = vpop.permute.xlu0 %140
    %142 = vrot.lane.b32.xlu0 %v48, 124
    %v143 = vpop.permute.xlu0 %142
    %144 = vrot.lane.b32.xlu0 %v52, 124
    %v145 = vpop.permute.xlu0 %144
    %vm146 = vcmp.lt.s32.totalorder %v70, 124
    %v147 = vsel %vm146, %v139, %v143
    %v148 = vsel %vm146, %v141, %v145
    %v149 = vsel %vm146, %v135, %v139
    %v150 = vsel %vm146, %v137, %v141
    %v151 = vsel %vm146, %v131, %v135
    %v152 = vsel %vm146, %v133, %v137
    %v153 = vsel %vm146, %v143, %v131
    %v154 = vsel %vm146, %v145, %v133
    %156 = vset.pattern.permute.xlu0 0
    %157 = vperm.xlu0 %156, %v36
    %v158 = vpop.permute.xlu0 %157
    %vm160 = vcmask 654336
    %v162 = vsel %vm160, %v35, 0
    %164 = vmatprep.subr.mxu0 %v46
    %165 = vmatpush1.msra.mxu0 %v45
    %166 = vmatprep.subr.mxu0 %v50
    %167 = vmatpush1.msra.mxu0 %v49
    %168 = vmatprep.subr.mxu0 %v74
    %169 = vmatpush1.msra.mxu0 %v76
    %170 = vmatprep.subr.mxu0 %v75
    %171 = vmatpush1.msra.mxu0 %v77
    %172 = vmatprep.subr.mxu0 %v99
    %173 = vmatpush1.msra.mxu0 %v101
    %174 = vmatprep.subr.mxu0 %v100
    %175 = vmatpush1.msra.mxu0 %v102
    %176 = vmatprep.subr.mxu0 %v124
    %177 = vmatpush1.msra.mxu0 %v126
    %178 = vmatprep.subr.mxu0 %v125
    %179 = vmatpush1.msra.mxu0 %v127
    %180 = vmatprep.subr.mxu0 %v149
    %181 = vmatpush1.msra.mxu0 %v151
    %182 = vmatprep.subr.mxu0 %v150
    %183 = vmatpush1.msra.mxu0 %v152
    %184 = vmatprep.subr.mxu0 0.0
    %185 = vmatpush1.msra.mxu0 0.0
    %186 = vmatprep.subr.mxu0 0.0
    %187 = vmatpush1.msra.mxu0 0.0
    %188 = vmatprep.subr.mxu0 0.0
    %189 = vmatpush1.msra.mxu0 0.0
    %190 = vmatprep.subr.mxu0 0.0
    %191 = vmatpush1.msra.mxu0 0.0
    %192 = vmatprep.subr.mxu0 0.0
    %193 = vmatpush1.msra.mxu0 0.0
    %194 = vmatprep.subr.mxu0 0.0
    %195 = vmatpush1.msra.mxu0 0.0
    %196 = vmatprep.subr.mxu0 0.0
    %197 = vmatpush1.msra.mxu0 0.0
    %198 = vmatprep.subr.mxu0 0.0
    %199 = vmatpush1.msra.mxu0 0.0
    %200 = vmatprep.subr.mxu0 0.0
    %201 = vmatpush1.msra.mxu0 0.0
    %202 = vmatprep.subr.mxu0 0.0
    %203 = vmatpush1.msra.mxu0 0.0
    %204 = vmatprep.subr.mxu0 0.0
    %205 = vmatpush1.msra.mxu0 0.0
    %206 = vmatprep.subr.mxu0 0.0
    %207 = vmatpush1.msra.mxu0 0.0
    %208 = vmatprep.subr.mxu0 0.0
    %209 = vmatpush1.msra.mxu0 0.0
    %210 = vmatprep.subr.mxu0 0.0
    %211 = vmatpush1.msra.mxu0 0.0
    %212 = vmatprep.subr.mxu0 0.0
    %213 = vmatpush1.msra.mxu0 0.0
    %214 = vmatprep.subr.mxu0 0.0
    %215 = vmatpush1.msra.mxu0 0.0
    %216 = vmatprep.subr.mxu0 0.0
    %217 = vmatpush1.msra.mxu0 0.0
    %218 = vmatprep.subr.mxu0 0.0
    %219 = vmatpush1.msra.mxu0 0.0
    %220 = vmatprep.subr.mxu0 0.0
    %221 = vmatpush1.msra.mxu0 0.0
    %222 = vmatprep.subr.mxu0 0.0
    %223 = vmatpush1.msra.mxu0 0.0
    %224 = vmatprep.subr.mxu0 0.0
    %225 = vmatpush1.msra.mxu0 0.0
    %226 = vmatprep.subr.mxu0 0.0
    %227 = vmatpush1.msra.mxu0 0.0
    %228 = vmatprep.mubr.f32.mxu0 0.0
    %229 = vmatmul.mubr.f32.gmra.mrb[0].mxu0 %v162
    %v230 = vpop.f32.mrb[0].mxu0
    %v231 = vadd.f32 %v158, %v230
    %v232 = vpop.f32.mrb[0].mxu0
    %v233 = vadd.f32 %v158, %v232
    %234 = vdwg.mxu0
    %235 = vmatprep.subr.mxu0 %v48
    %236 = vmatpush1.msra.mxu0 %v47
    %237 = vmatprep.subr.mxu0 %v52
    %238 = vmatpush1.msra.mxu0 %v51
    %239 = vmatprep.subr.mxu0 %v78
    %240 = vmatpush1.msra.mxu0 %v72
    %241 = vmatprep.subr.mxu0 %v79
    %242 = vmatpush1.msra.mxu0 %v73
    %243 = vmatprep.subr.mxu0 %v103
    %244 = vmatpush1.msra.mxu0 %v97
    %245 = vmatprep.subr.mxu0 %v104
    %246 = vmatpush1.msra.mxu0 %v98
    %247 = vmatprep.subr.mxu0 %v128
    %248 = vmatpush1.msra.mxu0 %v122
    %249 = vmatprep.subr.mxu0 %v129
    %250 = vmatpush1.msra.mxu0 %v123
    %251 = vmatprep.subr.mxu0 %v153
    %252 = vmatpush1.msra.mxu0 %v147
    %253 = vmatprep.subr.mxu0 %v154
    %254 = vmatpush1.msra.mxu0 %v148
    %255 = vmatprep.subr.mxu0 0.0
    %256 = vmatpush1.msra.mxu0 0.0
    %257 = vmatprep.subr.mxu0 0.0
    %258 = vmatpush1.msra.mxu0 0.0
    %259 = vmatprep.subr.mxu0 0.0
    %260 = vmatpush1.msra.mxu0 0.0
    %261 = vmatprep.subr.mxu0 0.0
    %262 = vmatpush1.msra.mxu0 0.0
    %263 = vmatprep.subr.mxu0 0.0
    %264 = vmatpush1.msra.mxu0 0.0
    %265 = vmatprep.subr.mxu0 0.0
    %266 = vmatpush1.msra.mxu0 0.0
    %267 = vmatprep.subr.mxu0 0.0
    %268 = vmatpush1.msra.mxu0 0.0
    %269 = vmatprep.subr.mxu0 0.0
    %270 = vmatpush1.msra.mxu0 0.0
    %271 = vmatprep.subr.mxu0 0.0
    %272 = vmatpush1.msra.mxu0 0.0
    %273 = vmatprep.subr.mxu0 0.0
    %274 = vmatpush1.msra.mxu0 0.0
    %275 = vmatprep.subr.mxu0 0.0
    %276 = vmatpush1.msra.mxu0 0.0
    %277 = vmatprep.subr.mxu0 0.0
    %278 = vmatpush1.msra.mxu0 0.0
    %279 = vmatprep.subr.mxu0 0.0
    %280 = vmatpush1.msra.mxu0 0.0
    %281 = vmatprep.subr.mxu0 0.0
    %282 = vmatpush1.msra.mxu0 0.0
    %283 = vmatprep.subr.mxu0 0.0
    %284 = vmatpush1.msra.mxu0 0.0
    %285 = vmatprep.subr.mxu0 0.0
    %286 = vmatpush1.msra.mxu0 0.0
    %287 = vmatprep.subr.mxu0 0.0
    %288 = vmatpush1.msra.mxu0 0.0
    %289 = vmatprep.subr.mxu0 0.0
    %290 = vmatpush1.msra.mxu0 0.0
    %291 = vmatprep.subr.mxu0 0.0
    %292 = vmatpush1.msra.mxu0 0.0
    %293 = vmatprep.subr.mxu0 0.0
    %294 = vmatpush1.msra.mxu0 0.0
    %295 = vmatprep.subr.mxu0 0.0
    %296 = vmatpush1.msra.mxu0 0.0
    %297 = vmatprep.subr.mxu0 0.0
    %298 = vmatpush1.msra.mxu0 0.0
    %299 = vmatprep.mubr.f32.mxu0 0.0
    %300 = vmatmul.mubr.f32.gmra.mrb[0].mxu0 %v162
    %v301 = vpop.f32.mrb[0].mxu0
    %v302 = vadd.f32 %v158, %v301
    %v303 = vpop.f32.mrb[0].mxu0
    %v304 = vadd.f32 %v158, %v303
    %305 = vdwg.mxu0
    %v306 = vmax.f32 %v231, 0.0
    %v307 = vmax.f32 %v233, 0.0
    %v308 = vmax.f32 %v302, 0.0
    %v309 = vmax.f32 %v304, 0.0
    %vm310 = vcmp.ne.f32.partialorder %v231, %v231
    %vm311 = vcmp.ne.f32.partialorder %v233, %v233
    %vm312 = vcmp.ne.f32.partialorder %v302, %v302
    %vm313 = vcmp.ne.f32.partialorder %v304, %v304
    %v314 = vadd.f32 %v231, 0.0
    %v315 = vadd.f32 %v233, 0.0
    %v316 = vadd.f32 %v302, 0.0
    %v317 = vadd.f32 %v304, 0.0
    %v318 = vand.u32 2147483647, %v231
    %v319 = vand.u32 2147483647, %v233
    %v320 = vand.u32 2147483647, %v302
    %v321 = vand.u32 2147483647, %v304
    %v322 = vsub.f32 0.0, %v318
    %v323 = vsub.f32 0.0, %v319
    %v324 = vsub.f32 0.0, %v320
    %v325 = vsub.f32 0.0, %v321
    %v326 = vmul.f32 %v322, 1.442695
    %v327 = vpow.pop %v326
    %v328 = vmul.f32 %v323, 1.442695
    %v329 = vpow.pop %v328
    %v330 = vmul.f32 %v324, 1.442695
    %v331 = vpow.pop %v330
    %v332 = vmul.f32 %v325, 1.442695
    %v333 = vpow.pop %v332
    %v334 = vadd.f32 %v327, 1.0
    %v335 = vlog2.pop %v334
    %v336 = vmul.f32 %v335, 0.6931472
    %v337 = vmul.f32 -0.5, %v327
    %v338 = vadd.f32 %v337, 1.0
    %v339 = vmul.f32 %v338, %v327
    %v340 = vand.u32 2147483647, %v327
    %vm341 = vcmp.lt.f32.partialorder %v340, 0.0004427343
    %v342 = vsel %vm341, %v339, %v336
    %v343 = vadd.f32 %v329, 1.0
    %v344 = vlog2.pop %v343
    %v345 = vmul.f32 %v344, 0.6931472
    %v346 = vmul.f32 -0.5, %v329
    %v347 = vadd.f32 %v346, 1.0
    %v348 = vmul.f32 %v347, %v329
    %v349 = vand.u32 2147483647, %v329
    %vm350 = vcmp.lt.f32.partialorder %v349, 0.0004427343
    %v351 = vsel %vm350, %v348, %v345
    %v352 = vadd.f32 %v331, 1.0
    %v353 = vlog2.pop %v352
    %v354 = vmul.f32 %v353, 0.6931472
    %v355 = vmul.f32 -0.5, %v331
    %v356 = vadd.f32 %v355, 1.0
    %v357 = vmul.f32 %v356, %v331
    %v358 = vand.u32 2147483647, %v331
    %vm359 = vcmp.lt.f32.partialorder %v358, 0.0004427343
    %v360 = vsel %vm359, %v357, %v354
    %v361 = vadd.f32 %v333, 1.0
    %v362 = vlog2.pop %v361
    %v363 = vmul.f32 %v362, 0.6931472
    %v364 = vmul.f32 -0.5, %v333
    %v365 = vadd.f32 %v364, 1.0
    %v366 = vmul.f32 %v365, %v333
    %v367 = vand.u32 2147483647, %v333
    %vm368 = vcmp.lt.f32.partialorder %v367, 0.0004427343
    %v369 = vsel %vm368, %v366, %v363
    %v370 = vadd.f32 %v306, %v342
    %v371 = vadd.f32 %v307, %v351
    %v372 = vadd.f32 %v308, %v360
    %v373 = vadd.f32 %v309, %v369
    %v374 = vsel %vm310, %v314, %v370
    %v375 = vsel %vm311, %v315, %v371
    %v376 = vsel %vm312, %v316, %v372
    %v377 = vsel %vm313, %v317, %v373
    %v378 = vtanh.pop %v374
    %v379 = vtanh.pop %v375
    %v380 = vtanh.pop %v376
    %v381 = vtanh.pop %v377
    %v382 = vmul.f32 %v231, %v378
    %v383 = vmul.f32 %v233, %v379
    %v384 = vmul.f32 %v302, %v380
    %v385 = vmul.f32 %v304, %v381
    %vm386 = vcmp.ge.s32.totalorder %v70, 1
    %vm387 = vcmp.lt.s32.totalorder %v70, 67
    %vm388 = vmand %vm386, %vm387
    %v389 = vsel %vm388, %v382, 0.0
    %v390 = vsel %vm388, %v383, 0.0
    %v391 = vsel %vm388, %v384, 0.0
    %v392 = vsel %vm388, %v385, 0.0
    %393 = vrot.lane.b32.xlu0 %v389, 127
    %v394 = vpop.permute.xlu0 %393
    %395 = vrot.lane.b32.xlu0 %v390, 127
    %v396 = vpop.permute.xlu0 %395
    %397 = vrot.lane.b32.xlu0 %v391, 127
    %v398 = vpop.permute.xlu0 %397
    %399 = vrot.lane.b32.xlu0 %v392, 127
    %v400 = vpop.permute.xlu0 %399
    %v401 = vsel %vm71, %v398, %v400
    %v402 = vsel %vm71, %v396, %v398
    %v403 = vsel %vm71, %v394, %v396
    %v404 = vsel %vm71, %v400, %v394
    %405 = vrot.lane.b32.xlu0 %v389, 126
    %v406 = vpop.permute.xlu0 %405
    %407 = vrot.lane.b32.xlu0 %v390, 126
    %v408 = vpop.permute.xlu0 %407
    %409 = vrot.lane.b32.xlu0 %v391, 126
    %v410 = vpop.permute.xlu0 %409
    %411 = vrot.lane.b32.xlu0 %v392, 126
    %v412 = vpop.permute.xlu0 %411
    %v413 = vsel %vm96, %v410, %v412
    %v414 = vsel %vm96, %v408, %v410
    %v415 = vsel %vm96, %v406, %v408
    %v416 = vsel %vm96, %v412, %v406
    %417 = vrot.lane.b32.xlu0 %v389, 125
    %v418 = vpop.permute.xlu0 %417
    %419 = vrot.lane.b32.xlu0 %v390, 125
    %v420 = vpop.permute.xlu0 %419
    %421 = vrot.lane.b32.xlu0 %v391, 125
    %v422 = vpop.permute.xlu0 %421
    %423 = vrot.lane.b32.xlu0 %v392, 125
    %v424 = vpop.permute.xlu0 %423
    %v425 = vsel %vm121, %v422, %v424
    %v426 = vsel %vm121, %v420, %v422
    %v427 = vsel %vm121, %v418, %v420
    %v428 = vsel %vm121, %v424, %v418
    %429 = vrot.lane.b32.xlu0 %v389, 124
    %v430 = vpop.permute.xlu0 %429
    %431 = vrot.lane.b32.xlu0 %v390, 124
    %v432 = vpop.permute.xlu0 %431
    %433 = vrot.lane.b32.xlu0 %v391, 124
    %v434 = vpop.permute.xlu0 %433
    %435 = vrot.lane.b32.xlu0 %v392, 124
    %v436 = vpop.permute.xlu0 %435
    %v437 = vsel %vm146, %v434, %v436
    %v438 = vsel %vm146, %v432, %v434
    %v439 = vsel %vm146, %v430, %v432
    %v440 = vsel %vm146, %v436, %v430
    %442 = vset.pattern.permute.xlu0 0
    %443 = vperm.xlu0 %442, %v41
    %v444 = vpop.permute.xlu0 %443
    %447 = vset.pattern.permute.xlu0 0
    %448 = vperm.xlu0 %447, %v42
    %v449 = vpop.permute.xlu0 %448
    %452 = vset.pattern.permute.xlu0 0
    %453 = vperm.xlu0 %452, %v43
    %v454 = vpop.permute.xlu0 %453
    %457 = vset.pattern.permute.xlu0 0
    %458 = vperm.xlu0 %457, %v44
    %v459 = vpop.permute.xlu0 %458
    %vm461 = vcmask 326656
    %v463 = vsel %vm461, %v37, 0
    %v466 = vsel %vm461, %v38, 0
    %v469 = vsel %vm461, %v39, 0
    %v472 = vsel %vm461, %v40, 0
    %474 = vmatprep.subr.mxu0 %v390
    %475 = vmatpush1.msra.mxu0 %v389
    %476 = vmatprep.subr.mxu0 %v402
    %477 = vmatpush1.msra.mxu0 %v403
    %478 = vmatprep.subr.mxu0 %v414
    %479 = vmatpush1.msra.mxu0 %v415
    %480 = vmatprep.subr.mxu0 %v426
    %481 = vmatpush1.msra.mxu0 %v427
    %482 = vmatprep.subr.mxu0 %v438
    %483 = vmatpush1.msra.mxu0 %v439
    %484 = vmatprep.subr.mxu0 0.0
    %485 = vmatpush1.msra.mxu0 0.0
    %486 = vmatprep.subr.mxu0 0.0
    %487 = vmatpush1.msra.mxu0 0.0
    %488 = vmatprep.subr.mxu0 0.0
    %489 = vmatpush1.msra.mxu0 0.0
    %490 = vmatprep.subr.mxu0 0.0
    %491 = vmatpush1.msra.mxu0 0.0
    %492 = vmatprep.subr.mxu0 0.0
    %493 = vmatpush1.msra.mxu0 0.0
    %494 = vmatprep.subr.mxu0 0.0
    %495 = vmatpush1.msra.mxu0 0.0
    %496 = vmatprep.subr.mxu0 0.0
    %497 = vmatpush1.msra.mxu0 0.0
    %498 = vmatprep.subr.mxu0 0.0
    %499 = vmatpush1.msra.mxu0 0.0
    %500 = vmatprep.subr.mxu0 0.0
    %501 = vmatpush1.msra.mxu0 0.0
    %502 = vmatprep.subr.mxu0 0.0
    %503 = vmatpush1.msra.mxu0 0.0
    %504 = vmatprep.subr.mxu0 0.0
    %505 = vmatpush1.msra.mxu0 0.0
    %506 = vmatprep.subr.mxu0 0.0
    %507 = vmatpush1.msra.mxu0 0.0
    %508 = vmatprep.subr.mxu0 0.0
    %509 = vmatpush1.msra.mxu0 0.0
    %510 = vmatprep.subr.mxu0 0.0
    %511 = vmatpush1.msra.mxu0 0.0
    %512 = vmatprep.subr.mxu0 0.0
    %513 = vmatpush1.msra.mxu0 0.0
    %514 = vmatprep.subr.mxu0 0.0
    %515 = vmatpush1.msra.mxu0 0.0
    %516 = vmatprep.subr.mxu0 0.0
    %517 = vmatpush1.msra.mxu0 0.0
    %518 = vmatprep.subr.mxu0 0.0
    %519 = vmatpush1.msra.mxu0 0.0
    %520 = vmatprep.subr.mxu0 0.0
    %521 = vmatpush1.msra.mxu0 0.0
    %522 = vmatprep.subr.mxu0 0.0
    %523 = vmatpush1.msra.mxu0 0.0
    %524 = vmatprep.subr.mxu0 0.0
    %525 = vmatpush1.msra.mxu0 0.0
    %526 = vmatprep.subr.mxu0 0.0
    %527 = vmatpush1.msra.mxu0 0.0
    %528 = vmatprep.subr.mxu0 0.0
    %529 = vmatpush1.msra.mxu0 0.0
    %530 = vmatprep.subr.mxu0 0.0
    %531 = vmatpush1.msra.mxu0 0.0
    %532 = vmatprep.subr.mxu0 0.0
    %533 = vmatpush1.msra.mxu0 0.0
    %534 = vmatprep.subr.mxu0 0.0
    %535 = vmatpush1.msra.mxu0 0.0
    %536 = vmatprep.subr.mxu0 0.0
    %537 = vmatpush1.msra.mxu0 0.0
    %538 = vmatprep.mubr.f32.mxu0 0.0
    %539 = vmatmul.mubr.f32.gmra.mrb[0].mxu0 %v463
    %v540 = vpop.f32.mrb[0].mxu0
    %v541 = vadd.f32 %v444, %v540
    %v542 = vpop.f32.mrb[0].mxu0
    %v543 = vadd.f32 %v444, %v542
    %544 = vmatprep.mubr.f32.mxu0 0.0
    %545 = vmatmul.mubr.f32.gmra.mrb[0].mxu0 %v466
    %v546 = vpop.f32.mrb[0].mxu0
    %v547 = vadd.f32 %v449, %v546
    %v548 = vpop.f32.mrb[0].mxu0
    %v549 = vadd.f32 %v449, %v548
    %550 = vmatprep.mubr.f32.mxu0 0.0
    %551 = vmatmul.mubr.f32.gmra.mrb[0].mxu0 %v469
    %v552 = vpop.f32.mrb[0].mxu0
    %v553 = vadd.f32 %v454, %v552
    %v554 = vpop.f32.mrb[0].mxu0
    %v555 = vadd.f32 %v454, %v554
    %556 = vmatprep.mubr.f32.mxu0 0.0
    %557 = vmatmul.mubr.f32.gmra.mrb[0].mxu0 %v472
    %v558 = vpop.f32.mrb[0].mxu0
    %v559 = vadd.f32 %v459, %v558
    %v560 = vpop.f32.mrb[0].mxu0
    %v561 = vadd.f32 %v459, %v560
    %562 = vdwg.mxu0
    %563 = vmatprep.subr.mxu0 %v392
    %564 = vmatpush1.msra.mxu0 %v391
    %565 = vmatprep.subr.mxu0 %v404
    %566 = vmatpush1.msra.mxu0 %v401
    %567 = vmatprep.subr.mxu0 %v416
    %568 = vmatpush1.msra.mxu0 %v413
    %569 = vmatprep.subr.mxu0 %v428
    %570 = vmatpush1.msra.mxu0 %v425
    %571 = vmatprep.subr.mxu0 %v440
    %572 = vmatpush1.msra.mxu0 %v437
    %573 = vmatprep.subr.mxu0 0.0
    %574 = vmatpush1.msra.mxu0 0.0
    %575 = vmatprep.subr.mxu0 0.0
    %576 = vmatpush1.msra.mxu0 0.0
    %577 = vmatprep.subr.mxu0 0.0
    %578 = vmatpush1.msra.mxu0 0.0
    %579 = vmatprep.subr.mxu0 0.0
    %580 = vmatpush1.msra.mxu0 0.0
    %581 = vmatprep.subr.mxu0 0.0
    %582 = vmatpush1.msra.mxu0 0.0
    %583 = vmatprep.subr.mxu0 0.0
    %584 = vmatpush1.msra.mxu0 0.0
    %585 = vmatprep.subr.mxu0 0.0
    %586 = vmatpush1.msra.mxu0 0.0
    %587 = vmatprep.subr.mxu0 0.0
    %588 = vmatpush1.msra.mxu0 0.0
    %589 = vmatprep.subr.mxu0 0.0
    %590 = vmatpush1.msra.mxu0 0.0
    %591 = vmatprep.subr.mxu0 0.0
    %592 = vmatpush1.msra.mxu0 0.0
    %593 = vmatprep.subr.mxu0 0.0
    %594 = vmatpush1.msra.mxu0 0.0
    %595 = vmatprep.subr.mxu0 0.0
    %596 = vmatpush1.msra.mxu0 0.0
    %597 = vmatprep.subr.mxu0 0.0
    %598 = vmatpush1.msra.mxu0 0.0
    %599 = vmatprep.subr.mxu0 0.0
    %600 = vmatpush1.msra.mxu0 0.0
    %601 = vmatprep.subr.mxu0 0.0
    %602 = vmatpush1.msra.mxu0 0.0
    %603 = vmatprep.subr.mxu0 0.0
    %604 = vmatpush1.msra.mxu0 0.0
    %605 = vmatprep.subr.mxu0 0.0
    %606 = vmatpush1.msra.mxu0 0.0
    %607 = vmatprep.subr.mxu0 0.0
    %608 = vmatpush1.msra.mxu0 0.0
    %609 = vmatprep.subr.mxu0 0.0
    %610 = vmatpush1.msra.mxu0 0.0
    %611 = vmatprep.subr.mxu0 0.0
    %612 = vmatpush1.msra.mxu0 0.0
    %613 = vmatprep.subr.mxu0 0.0
    %614 = vmatpush1.msra.mxu0 0.0
    %615 = vmatprep.subr.mxu0 0.0
    %616 = vmatpush1.msra.mxu0 0.0
    %617 = vmatprep.subr.mxu0 0.0
    %618 = vmatpush1.msra.mxu0 0.0
    %619 = vmatprep.subr.mxu0 0.0
    %620 = vmatpush1.msra.mxu0 0.0
    %621 = vmatprep.subr.mxu0 0.0
    %622 = vmatpush1.msra.mxu0 0.0
    %623 = vmatprep.subr.mxu0 0.0
    %624 = vmatpush1.msra.mxu0 0.0
    %625 = vmatprep.subr.mxu0 0.0
    %626 = vmatpush1.msra.mxu0 0.0
    %627 = vmatprep.mubr.f32.mxu0 0.0
    %628 = vmatmul.mubr.f32.gmra.mrb[0].mxu0 %v463
    %v629 = vpop.f32.mrb[0].mxu0
    %v630 = vadd.f32 %v444, %v629
    %v631 = vpop.f32.mrb[0].mxu0
    %v632 = vadd.f32 %v444, %v631
    %633 = vmatprep.mubr.f32.mxu0 0.0
    %634 = vmatmul.mubr.f32.gmra.mrb[0].mxu0 %v466
    %v635 = vpop.f32.mrb[0].mxu0
    %v636 = vadd.f32 %v449, %v635
    %v637 = vpop.f32.mrb[0].mxu0
    %v638 = vadd.f32 %v449, %v637
    %639 = vmatprep.mubr.f32.mxu0 0.0
    %640 = vmatmul.mubr.f32.gmra.mrb[0].mxu0 %v469
    %v641 = vpop.f32.mrb[0].mxu0
    %v642 = vadd.f32 %v454, %v641
    %v643 = vpop.f32.mrb[0].mxu0
    %v644 = vadd.f32 %v454, %v643
    %645 = vmatprep.mubr.f32.mxu0 0.0
    %646 = vmatmul.mubr.f32.gmra.mrb[0].mxu0 %v472
    %v647 = vpop.f32.mrb[0].mxu0
    %v648 = vadd.f32 %v459, %v647
    %v649 = vpop.f32.mrb[0].mxu0
    %v650 = vadd.f32 %v459, %v649
    %651 = vdwg.mxu0
    %v652 = vmax.f32 %v541, 0.0
    %v653 = vmax.f32 %v543, 0.0
    %v654 = vmax.f32 %v630, 0.0
    %v655 = vmax.f32 %v632, 0.0
    %v656 = vmax.f32 %v547, 0.0
    %v657 = vmax.f32 %v549, 0.0
    %v658 = vmax.f32 %v636, 0.0
    %v659 = vmax.f32 %v638, 0.0
    %v660 = vmax.f32 %v553, 0.0
    %v661 = vmax.f32 %v555, 0.0
    %v662 = vmax.f32 %v642, 0.0
    %v663 = vmax.f32 %v644, 0.0
    %v664 = vmax.f32 %v559, 0.0
    %v665 = vmax.f32 %v561, 0.0
    %v666 = vmax.f32 %v648, 0.0
    %v667 = vmax.f32 %v650, 0.0
    %vm668 = vcmp.ne.f32.partialorder %v541, %v541
    %vm669 = vcmp.ne.f32.partialorder %v543, %v543
    %vm670 = vcmp.ne.f32.partialorder %v630, %v630
    %vm671 = vcmp.ne.f32.partialorder %v632, %v632
    %vm672 = vcmp.ne.f32.partialorder %v547, %v547
    %vm673 = vcmp.ne.f32.partialorder %v549, %v549
    %vm674 = vcmp.ne.f32.partialorder %v636, %v636
    %vm675 = vcmp.ne.f32.partialorder %v638, %v638
    %vm676 = vcmp.ne.f32.partialorder %v553, %v553
    %vm677 = vcmp.ne.f32.partialorder %v555, %v555
    %vm678 = vcmp.ne.f32.partialorder %v642, %v642
    %vm679 = vcmp.ne.f32.partialorder %v644, %v644
    %vm680 = vcmp.ne.f32.partialorder %v559, %v559
    %vm681 = vcmp.ne.f32.partialorder %v561, %v561
    %vm682 = vcmp.ne.f32.partialorder %v648, %v648
    %vm683 = vcmp.ne.f32.partialorder %v650, %v650
    %v684 = vadd.f32 %v541, 0.0
    %v685 = vadd.f32 %v543, 0.0
    %v686 = vadd.f32 %v630, 0.0
    %v687 = vadd.f32 %v632, 0.0
    %v688 = vadd.f32 %v547, 0.0
    %v689 = vadd.f32 %v549, 0.0
    %v690 = vadd.f32 %v636, 0.0
    %v691 = vadd.f32 %v638, 0.0
    %v692 = vadd.f32 %v553, 0.0
    %v693 = vadd.f32 %v555, 0.0
    %v694 = vadd.f32 %v642, 0.0
    %v695 = vadd.f32 %v644, 0.0
    %v696 = vadd.f32 %v559, 0.0
    %v697 = vadd.f32 %v561, 0.0
    %v698 = vadd.f32 %v648, 0.0
    %v699 = vadd.f32 %v650, 0.0
    %v700 = vand.u32 2147483647, %v541
    %v701 = vand.u32 2147483647, %v543
    %v702 = vand.u32 2147483647, %v630
    %v703 = vand.u32 2147483647, %v632
    %v704 = vand.u32 2147483647, %v547
    %v705 = vand.u32 2147483647, %v549
    %v706 = vand.u32 2147483647, %v636
    %v707 = vand.u32 2147483647, %v638
    %v708 = vand.u32 2147483647, %v553
    %v709 = vand.u32 2147483647, %v555
    %v710 = vand.u32 2147483647, %v642
    %v711 = vand.u32 2147483647, %v644
    %v712 = vand.u32 2147483647, %v559
    %v713 = vand.u32 2147483647, %v561
    %v714 = vand.u32 2147483647, %v648
    %v715 = vand.u32 2147483647, %v650
    %v716 = vsub.f32 0.0, %v700
    %v717 = vsub.f32 0.0, %v701
    %v718 = vsub.f32 0.0, %v702
    %v719 = vsub.f32 0.0, %v703
    %v720 = vsub.f32 0.0, %v704
    %v721 = vsub.f32 0.0, %v705
    %v722 = vsub.f32 0.0, %v706
    %v723 = vsub.f32 0.0, %v707
    %v724 = vsub.f32 0.0, %v708
    %v725 = vsub.f32 0.0, %v709
    %v726 = vsub.f32 0.0, %v710
    %v727 = vsub.f32 0.0, %v711
    %v728 = vsub.f32 0.0, %v712
    %v729 = vsub.f32 0.0, %v713
    %v730 = vsub.f32 0.0, %v714
    %v731 = vsub.f32 0.0, %v715
    %v732 = vmul.f32 %v716, 1.442695
    %v733 = vpow.pop %v732
    %v734 = vmul.f32 %v717, 1.442695
    %v735 = vpow.pop %v734
    %v736 = vmul.f32 %v718, 1.442695
    %v737 = vpow.pop %v736
    %v738 = vmul.f32 %v719, 1.442695
    %v739 = vpow.pop %v738
    %v740 = vmul.f32 %v720, 1.442695
    %v741 = vpow.pop %v740
    %v742 = vmul.f32 %v721, 1.442695
    %v743 = vpow.pop %v742
    %v744 = vmul.f32 %v722, 1.442695
    %v745 = vpow.pop %v744
    %v746 = vmul.f32 %v723, 1.442695
    %v747 = vpow.pop %v746
    %v748 = vmul.f32 %v724, 1.442695
    %v749 = vpow.pop %v748
    %v750 = vmul.f32 %v725, 1.442695
    %v751 = vpow.pop %v750
    %v752 = vmul.f32 %v726, 1.442695
    %v753 = vpow.pop %v752
    %v754 = vmul.f32 %v727, 1.442695
    %v755 = vpow.pop %v754
    %v756 = vmul.f32 %v728, 1.442695
    %v757 = vpow.pop %v756
    %v758 = vmul.f32 %v729, 1.442695
    %v759 = vpow.pop %v758
    %v760 = vmul.f32 %v730, 1.442695
    %v761 = vpow.pop %v760
    %v762 = vmul.f32 %v731, 1.442695
    %v763 = vpow.pop %v762
    %v764 = vadd.f32 %v733, 1.0
    %v765 = vlog2.pop %v764
    %v766 = vmul.f32 %v765, 0.6931472
    %v767 = vmul.f32 -0.5, %v733
    %v768 = vadd.f32 %v767, 1.0
    %v769 = vmul.f32 %v768, %v733
    %v770 = vand.u32 2147483647, %v733
    %vm771 = vcmp.lt.f32.partialorder %v770, 0.0004427343
    %v772 = vsel %vm771, %v769, %v766
    %v773 = vadd.f32 %v735, 1.0
    %v774 = vlog2.pop %v773
    %v775 = vmul.f32 %v774, 0.6931472
    %v776 = vmul.f32 -0.5, %v735
    %v777 = vadd.f32 %v776, 1.0
    %v778 = vmul.f32 %v777, %v735
    %v779 = vand.u32 2147483647, %v735
    %vm780 = vcmp.lt.f32.partialorder %v779, 0.0004427343
    %v781 = vsel %vm780, %v778, %v775
    %v782 = vadd.f32 %v737, 1.0
    %v783 = vlog2.pop %v782
    %v784 = vmul.f32 %v783, 0.6931472
    %v785 = vmul.f32 -0.5, %v737
    %v786 = vadd.f32 %v785, 1.0
    %v787 = vmul.f32 %v786, %v737
    %v788 = vand.u32 2147483647, %v737
    %vm789 = vcmp.lt.f32.partialorder %v788, 0.0004427343
    %v790 = vsel %vm789, %v787, %v784
    %v791 = vadd.f32 %v739, 1.0
    %v792 = vlog2.pop %v791
    %v793 = vmul.f32 %v792, 0.6931472
    %v794 = vmul.f32 -0.5, %v739
    %v795 = vadd.f32 %v794, 1.0
    %v796 = vmul.f32 %v795, %v739
    %v797 = vand.u32 2147483647, %v739
    %vm798 = vcmp.lt.f32.partialorder %v797, 0.0004427343
    %v799 = vsel %vm798, %v796, %v793
    %v800 = vadd.f32 %v741, 1.0
    %v801 = vlog2.pop %v800
    %v802 = vmul.f32 %v801, 0.6931472
    %v803 = vmul.f32 -0.5, %v741
    %v804 = vadd.f32 %v803, 1.0
    %v805 = vmul.f32 %v804, %v741
    %v806 = vand.u32 2147483647, %v741
    %vm807 = vcmp.lt.f32.partialorder %v806, 0.0004427343
    %v808 = vsel %vm807, %v805, %v802
    %v809 = vadd.f32 %v743, 1.0
    %v810 = vlog2.pop %v809
    %v811 = vmul.f32 %v810, 0.6931472
    %v812 = vmul.f32 -0.5, %v743
    %v813 = vadd.f32 %v812, 1.0
    %v814 = vmul.f32 %v813, %v743
    %v815 = vand.u32 2147483647, %v743
    %vm816 = vcmp.lt.f32.partialorder %v815, 0.0004427343
    %v817 = vsel %vm816, %v814, %v811
    %v818 = vadd.f32 %v745, 1.0
    %v819 = vlog2.pop %v818
    %v820 = vmul.f32 %v819, 0.6931472
    %v821 = vmul.f32 -0.5, %v745
    %v822 = vadd.f32 %v821, 1.0
    %v823 = vmul.f32 %v822, %v745
    %v824 = vand.u32 2147483647, %v745
    %vm825 = vcmp.lt.f32.partialorder %v824, 0.0004427343
    %v826 = vsel %vm825, %v823, %v820
    %v827 = vadd.f32 %v747, 1.0
    %v828 = vlog2.pop %v827
    %v829 = vmul.f32 %v828, 0.6931472
    %v830 = vmul.f32 -0.5, %v747
    %v831 = vadd.f32 %v830, 1.0
    %v832 = vmul.f32 %v831, %v747
    %v833 = vand.u32 2147483647, %v747
    %vm834 = vcmp.lt.f32.partialorder %v833, 0.0004427343
    %v835 = vsel %vm834, %v832, %v829
    %v836 = vadd.f32 %v749, 1.0
    %v837 = vlog2.pop %v836
    %v838 = vmul.f32 %v837, 0.6931472
    %v839 = vmul.f32 -0.5, %v749
    %v840 = vadd.f32 %v839, 1.0
    %v841 = vmul.f32 %v840, %v749
    %v842 = vand.u32 2147483647, %v749
    %vm843 = vcmp.lt.f32.partialorder %v842, 0.0004427343
    %v844 = vsel %vm843, %v841, %v838
    %v845 = vadd.f32 %v751, 1.0
    %v846 = vlog2.pop %v845
    %v847 = vmul.f32 %v846, 0.6931472
    %v848 = vmul.f32 -0.5, %v751
    %v849 = vadd.f32 %v848, 1.0
    %v850 = vmul.f32 %v849, %v751
    %v851 = vand.u32 2147483647, %v751
    %vm852 = vcmp.lt.f32.partialorder %v851, 0.0004427343
    %v853 = vsel %vm852, %v850, %v847
    %v854 = vadd.f32 %v753, 1.0
    %v855 = vlog2.pop %v854
    %v856 = vmul.f32 %v855, 0.6931472
    %v857 = vmul.f32 -0.5, %v753
    %v858 = vadd.f32 %v857, 1.0
    %v859 = vmul.f32 %v858, %v753
    %v860 = vand.u32 2147483647, %v753
    %vm861 = vcmp.lt.f32.partialorder %v860, 0.0004427343
    %v862 = vsel %vm861, %v859, %v856
    %v863 = vadd.f32 %v755, 1.0
    %v864 = vlog2.pop %v863
    %v865 = vmul.f32 %v864, 0.6931472
    %v866 = vmul.f32 -0.5, %v755
    %v867 = vadd.f32 %v866, 1.0
    %v868 = vmul.f32 %v867, %v755
    %v869 = vand.u32 2147483647, %v755
    %vm870 = vcmp.lt.f32.partialorder %v869, 0.0004427343
    %v871 = vsel %vm870, %v868, %v865
    %v872 = vadd.f32 %v757, 1.0
    %v873 = vlog2.pop %v872
    %v874 = vmul.f32 %v873, 0.6931472
    %v875 = vmul.f32 -0.5, %v757
    %v876 = vadd.f32 %v875, 1.0
    %v877 = vmul.f32 %v876, %v757
    %v878 = vand.u32 2147483647, %v757
    %vm879 = vcmp.lt.f32.partialorder %v878, 0.0004427343
    %v880 = vsel %vm879, %v877, %v874
    %v881 = vadd.f32 %v759, 1.0
    %v882 = vlog2.pop %v881
    %v883 = vmul.f32 %v882, 0.6931472
    %v884 = vmul.f32 -0.5, %v759
    %v885 = vadd.f32 %v884, 1.0
    %v886 = vmul.f32 %v885, %v759
    %v887 = vand.u32 2147483647, %v759
    %vm888 = vcmp.lt.f32.partialorder %v887, 0.0004427343
    %v889 = vsel %vm888, %v886, %v883
    %v890 = vadd.f32 %v761, 1.0
    %v891 = vlog2.pop %v890
    %v892 = vmul.f32 %v891, 0.6931472
    %v893 = vmul.f32 -0.5, %v761
    %v894 = vadd.f32 %v893, 1.0
    %v895 = vmul.f32 %v894, %v761
    %v896 = vand.u32 2147483647, %v761
    %vm897 = vcmp.lt.f32.partialorder %v896, 0.0004427343
    %v898 = vsel %vm897, %v895, %v892
    %v899 = vadd.f32 %v763, 1.0
    %v900 = vlog2.pop %v899
    %v901 = vmul.f32 %v900, 0.6931472
    %v902 = vmul.f32 -0.5, %v763
    %v903 = vadd.f32 %v902, 1.0
    %v904 = vmul.f32 %v903, %v763
    %v905 = vand.u32 2147483647, %v763
    %vm906 = vcmp.lt.f32.partialorder %v905, 0.0004427343
    %v907 = vsel %vm906, %v904, %v901
    %v908 = vadd.f32 %v652, %v772
    %v909 = vadd.f32 %v653, %v781
    %v910 = vadd.f32 %v654, %v790
    %v911 = vadd.f32 %v655, %v799
    %v912 = vadd.f32 %v656, %v808
    %v913 = vadd.f32 %v657, %v817
    %v914 = vadd.f32 %v658, %v826
    %v915 = vadd.f32 %v659, %v835
    %v916 = vadd.f32 %v660, %v844
    %v917 = vadd.f32 %v661, %v853
    %v918 = vadd.f32 %v662, %v862
    %v919 = vadd.f32 %v663, %v871
    %v920 = vadd.f32 %v664, %v880
    %v921 = vadd.f32 %v665, %v889
    %v922 = vadd.f32 %v666, %v898
    %v923 = vadd.f32 %v667, %v907
    %v924 = vsel %vm668, %v684, %v908
    %v925 = vsel %vm669, %v685, %v909
    %v926 = vsel %vm670, %v686, %v910
    %v927 = vsel %vm671, %v687, %v911
    %v928 = vsel %vm672, %v688, %v912
    %v929 = vsel %vm673, %v689, %v913
    %v930 = vsel %vm674, %v690, %v914
    %v931 = vsel %vm675, %v691, %v915
    %v932 = vsel %vm676, %v692, %v916
    %v933 = vsel %vm677, %v693, %v917
    %v934 = vsel %vm678, %v694, %v918
    %v935 = vsel %vm679, %v695, %v919
    %v936 = vsel %vm680, %v696, %v920
    %v937 = vsel %vm681, %v697, %v921
    %v938 = vsel %vm682, %v698, %v922
    %v939 = vsel %vm683, %v699, %v923
    %v940 = vtanh.pop %v924
    %v941 = vtanh.pop %v925
    %v942 = vtanh.pop %v926
    %v943 = vtanh.pop %v927
    %v944 = vtanh.pop %v928
    %v945 = vtanh.pop %v929
    %v946 = vtanh.pop %v930
    %v947 = vtanh.pop %v931
    %v948 = vtanh.pop %v932
    %v949 = vtanh.pop %v933
    %v950 = vtanh.pop %v934
    %v951 = vtanh.pop %v935
    %v952 = vtanh.pop %v936
    %v953 = vtanh.pop %v937
    %v954 = vtanh.pop %v938
    %v955 = vtanh.pop %v939
    %v956 = vmul.f32 %v541, %v940
    %v957 = vmul.f32 %v543, %v941
    %v958 = vmul.f32 %v630, %v942
    %v959 = vmul.f32 %v632, %v943
    %v960 = vmul.f32 %v547, %v944
    %v961 = vmul.f32 %v549, %v945
    %v962 = vmul.f32 %v636, %v946
    %v963 = vmul.f32 %v638, %v947
    %v964 = vmul.f32 %v553, %v948
    %v965 = vmul.f32 %v555, %v949
    %v966 = vmul.f32 %v642, %v950
    %v967 = vmul.f32 %v644, %v951
    %v968 = vmul.f32 %v559, %v952
    %v969 = vmul.f32 %v561, %v953
    %v970 = vmul.f32 %v648, %v954
    %v971 = vmul.f32 %v650, %v955
    %972 = vst [vmem:[#allocation5] sm:$0xff] %v956
    %973 = vst [vmem:[#allocation5 + $0x8] sm:$0xff] %v957
    %974 = vst [vmem:[#allocation5 + $0x10] sm:$0xff] %v958
    %975 = vst [vmem:[#allocation5 + $0x18] sm:$0xff] %v959
    %976 = vst [vmem:[#allocation5 + $0x20] sm:$0xff] %v960
    %977 = vst [vmem:[#allocation5 + $0x28] sm:$0xff] %v961
    %978 = vst [vmem:[#allocation5 + $0x30] sm:$0xff] %v962
    %979 = vst [vmem:[#allocation5 + $0x38] sm:$0xff] %v963
    %980 = vst [vmem:[#allocation5 + $0x40] sm:$0xff] %v964
    %981 = vst [vmem:[#allocation5 + $0x48] sm:$0xff] %v965
    %982 = vst [vmem:[#allocation5 + $0x50] sm:$0xff] %v966
    %983 = vst [vmem:[#allocation5 + $0x58] sm:$0xff] %v967
    %984 = vst [vmem:[#allocation5 + $0x60] sm:$0xff] %v968
    %985 = vst [vmem:[#allocation5 + $0x68] sm:$0xff] %v969
    %986 = vst [vmem:[#allocation5 + $0x70] sm:$0xff] %v970
    %987 = vst [vmem:[#allocation5 + $0x78] sm:$0xff] %v971
    // Predicated region
    $region26: #{tpu_custom_call.1} parent=1 // pred_check
      _
    $region27: #{tpu_custom_call.1} parent=1 // pred_check_branch
      %989 = sbr.rel (0) target = $region29
    $region28: #{tpu_custom_call.1} parent=1 // pred_region
      %s991 = ssub.s32 2048, 2048
      %992 = vsyncadd [#allocation4], %s991
      %s993 = sshll.u32 [#allocation5], 4
      %s994 = int_to_ptr.vmem [resolvable:$true] %s993
      %999 = dma.vmem_to_hbm [thread:$0]  %s994, 2048, %s5, [#allocation4], 512, 512, 32
    $region29: #{tpu_custom_call.1} parent=1 // pred_fallthru
      _
    // Predicated region
    $region30: #{tpu_custom_call.1} parent=1 // pred_check
      _
    $region31: #{tpu_custom_call.1} parent=1 // pred_check_branch
      %1001 = sbr.rel (0) target = $region33
    $region32: #{tpu_custom_call.1} parent=1 // pred_region
      %1002 = dma.done [#allocation4], 2048
    $region33: #{tpu_custom_call.1} parent=1 // pred_fallthru
      _
    %1003 = vsyncpa [#allocation3], 1
    %1004 = vsyncpa [#allocation4], 1

</llo_original>
